<compile_context>
chip_gen: v7x
topology: tpu7x:2x2x1
jax: 0.10.0
libtpu: 0.0.40
codegen_flags: <defaults>
</compile_context>

<pallas_src>
import jax
import jax.numpy as jnp
from jax import lax
from jax.experimental import pallas as pl
from jax.experimental.pallas import tpu as pltpu


_NEG_INF = -1e30  # kills padded class columns in the softmax


def _round_up(x, m):
    return (x + m - 1) // m * m


def _craspell_row_tile_kernel(h1_ref, h2_ref,
                              wlin_ref, blin_ref,
                              wcopy_ref, bcopy_ref,
                              ln_g_ref, ln_b_ref,
                              wcl_ref, bcl_ref,
                              ids_ref, labels_ref, mask_ref,
                              cp_ref, part_ref):
    # bf16 activations/weights into the MXU, f32 accumulation.
    h1 = h1_ref[...]                     # (TM, H) bf16, "correct" branch
    h2 = h2_ref[...]                     # (TM, H) bf16, "noise" branch
    wlin = wlin_ref[...]                 # (H, Cp) bf16
    blin = blin_ref[...]                 # (1, Cp) f32 (-1e30 in padded columns)

    # ---- classifier head, correct branch: softmax + log_softmax ----
    logits = jnp.dot(h1, wlin, preferred_element_type=jnp.float32) + blin
    m1 = jnp.max(logits, axis=-1, keepdims=True)
    e1 = jnp.exp(logits - m1)
    s1 = jnp.sum(e1, axis=-1, keepdims=True)
    probabilities = e1 * pl.reciprocal(s1, approx=True)
    log_probs = (logits - m1) - jnp.log(s1)

    # ---- classifier head, noise branch: only the KL term consumes it ----
    logits2 = jnp.dot(h2, wlin, preferred_element_type=jnp.float32) + blin
    m2 = jnp.max(logits2, axis=-1, keepdims=True)
    e2 = jnp.exp(logits2 - m2)
    s2 = jnp.sum(e2, axis=-1, keepdims=True)
    probabilities2 = e2 * pl.reciprocal(s2, approx=True)
    log_probs2 = (logits2 - m2) - jnp.log(s2)

    # ---- copy branch: linear -> GELU -> LayerNorm -> reduce -> sigmoid ----
    cf = jnp.dot(h1, wcopy_ref[...], preferred_element_type=jnp.float32) + bcopy_ref[...]
    # TODO(synk): nn.GELU() is exact-erf; tanh approximation used (EUP-friendly).
    c0 = 0.7978845608028654
    cf = 0.5 * cf * (1.0 + jnp.tanh(c0 * (cf + 0.044715 * cf * cf * cf)))
    mu = jnp.mean(cf, axis=-1, keepdims=True)
    var = jnp.mean((cf - mu) ** 2, axis=-1, keepdims=True)
    cf = (cf - mu) * lax.rsqrt(var + 1e-5) * ln_g_ref[...] + ln_b_ref[...]
    # 1-output-column matmul -> VPU multiply + lane reduction (avoids a wasted MXU push)
    copy_logit = jnp.sum(cf * wcl_ref[...], axis=-1, keepdims=True) + bcl_ref[...]
    copy_prob = pl.reciprocal(1.0 + jnp.exp(-copy_logit), approx=True)   # sigmoid, (TM, 1)

    # torch.matmul(copy_prob, ones(1, C)) is a pure broadcast along the class axis.
    n_rows, n_class = cp_ref.shape
    col = lax.broadcasted_iota(jnp.int32, (n_rows, n_class), 1)
    one_hot_input = (col == ids_ref[...]).astype(jnp.float32)

    cp = copy_prob * one_hot_input + (1.0 - copy_prob) * probabilities
    cp = jnp.clip(cp, 1e-10, 1.0 - 1e-7)
    cp_log = jnp.log(cp)
    cp_ref[...] = cp

    # ---- per-tile loss partials (final reduce + alpha mix happen outside) ----
    one_hot_labels = (col == labels_ref[...]).astype(jnp.float32)
    mask = mask_ref[...]                                        # (TM, 1); 0 on padded rows
    per_ex = -jnp.sum(one_hot_labels * cp_log, axis=-1, keepdims=True) * mask
    ce_part = jnp.sum(per_ex)

    # symmetric KL between the two log-prob distributions (kl_for_log_probs both ways)
    kl1 = jnp.sum(probabilities * (log_probs - log_probs2), axis=-1, keepdims=True)
    kl2 = jnp.sum(probabilities2 * (log_probs2 - log_probs), axis=-1, keepdims=True)
    kl_part = jnp.sum(0.5 * (kl1 + kl2) * mask)

    ms_part = jnp.sum(mask)

    # lane-dense (1, 8, 128) partials tile: sublane 0 = CE num, 1 = KL num, 2 = mask sum
    row = lax.broadcasted_iota(jnp.int32, part_ref.shape, 1)
    part_ref[...] = (jnp.where(row == 0, ce_part, 0.0)
                     + jnp.where(row == 1, kl_part, 0.0)
                     + jnp.where(row == 2, ms_part, 0.0))


def craspell_head(h1, h2, params, input_ids_flat, labels_flat, lmask_flat, *, alpha=0.05):
    n_rows, hidden = h1.shape
    num_class = params["w_lin"].shape[1]
    copy_dim = params["w_copy"].shape[1]

    # Lane-dense class axis (multiple of 128); padded classes get a -1e30 bias.
    c_pad = _round_up(max(num_class, 128), 128)
    # Row tiling: TM up to 256, rows padded to a multiple of TM.
    tm = min(256, _round_up(n_rows, 8))
    n_pad = _round_up(n_rows, tm)
    n_tiles = n_pad // tm

    def pad_rows(x):
        return jnp.pad(x, ((0, n_pad - x.shape[0]), (0, 0)))

    h1_p = pad_rows(h1.astype(jnp.bfloat16))
    h2_p = pad_rows(h2.astype(jnp.bfloat16))
    ids_p = pad_rows(input_ids_flat.reshape(-1, 1).astype(jnp.int32))
    lab_p = pad_rows(labels_flat.reshape(-1, 1).astype(jnp.int32))
    msk_p = pad_rows(lmask_flat.reshape(-1, 1).astype(jnp.float32))

    w_lin = jnp.pad(params["w_lin"], ((0, 0), (0, c_pad - num_class))).astype(jnp.bfloat16)
    b_lin = jnp.pad(params["b_lin"], (0, c_pad - num_class),
                    constant_values=_NEG_INF).reshape(1, c_pad).astype(jnp.float32)
    w_copy = params["w_copy"].astype(jnp.bfloat16)
    b_copy = params["b_copy"].reshape(1, copy_dim).astype(jnp.float32)
    ln_g = params["ln_g"].reshape(1, copy_dim).astype(jnp.float32)
    ln_b = params["ln_b"].reshape(1, copy_dim).astype(jnp.float32)
    w_cl = params["w_cl"].reshape(1, copy_dim).astype(jnp.float32)
    b_cl = params["b_cl"].reshape(1, 1).astype(jnp.float32)

    row_spec = lambda i: (i, 0)
    const_spec = lambda i: (0, 0)

    cp_pad, partials = pl.pallas_call(
        _craspell_row_tile_kernel,
        grid=(n_tiles,),
        in_specs=[
            pl.BlockSpec((tm, hidden), row_spec),           # h1
            pl.BlockSpec((tm, hidden), row_spec),           # h2
            pl.BlockSpec((hidden, c_pad), const_spec),      # w_lin
            pl.BlockSpec((1, c_pad), const_spec),           # b_lin
            pl.BlockSpec((hidden, copy_dim), const_spec),   # w_copy
            pl.BlockSpec((1, copy_dim), const_spec),        # b_copy
            pl.BlockSpec((1, copy_dim), const_spec),        # ln_g
            pl.BlockSpec((1, copy_dim), const_spec),        # ln_b
            pl.BlockSpec((1, copy_dim), const_spec),        # w_cl (as a row)
            pl.BlockSpec((1, 1), const_spec),               # b_cl
            pl.BlockSpec((tm, 1), row_spec),                # input_ids
            pl.BlockSpec((tm, 1), row_spec),                # labels
            pl.BlockSpec((tm, 1), row_spec),                # label mask
        ],
        out_specs=(
            pl.BlockSpec((tm, c_pad), row_spec),                     # cp probabilities
            pl.BlockSpec((1, 8, 128), lambda i: (i, 0, 0)),          # loss partials
        ),
        out_shape=(
            jax.ShapeDtypeStruct((n_pad, c_pad), jnp.float32),
            jax.ShapeDtypeStruct((n_tiles, 8, 128), jnp.float32),
        ),
        compiler_params=pltpu.CompilerParams(
            dimension_semantics=("parallel",)),
    )(h1_p, h2_p, w_lin, b_lin, w_copy, b_copy, ln_g, ln_b, w_cl, b_cl,
      ids_p, lab_p, msk_p)

    # Final (tiny) reduction + alpha mix in plain JAX so the row grid axis stays parallel.
    ce_num = jnp.sum(partials[:, 0, 0])
    kl_num = jnp.sum(partials[:, 1, 0])
    msum = jnp.maximum(jnp.sum(partials[:, 2, 0]), 1e-12)   # guard fully-masked batch
    cp_loss = ce_num / msum
    kl_loss = kl_num / msum
    loss = (1.0 - alpha) * cp_loss + alpha * kl_loss

    cp = cp_pad[:n_rows, :num_class]
    return loss, cp


def bert_encoder_standin(params, input_ids, input_mask, segment_ids):
    # TODO(synk): the pretrained BertModel encoder is not re-implemented; it is replaced
    # by a deterministic token+position+segment embedding with LayerNorm producing
    # `last_hidden_state`.
    tok = params["tok_emb"][input_ids]                              # (B, S, H)
    pos = params["pos_emb"][None, :input_ids.shape[1], :]           # (1, S, H)
    seg = params["seg_emb"][segment_ids]                            # (B, S, H)
    h = tok + pos + seg
    mu = jnp.mean(h, axis=-1, keepdims=True)
    var = jnp.mean((h - mu) ** 2, axis=-1, keepdims=True)
    h = (h - mu) / jnp.sqrt(var + 1e-12)
    return h * input_mask[..., None].astype(h.dtype)


def craspell_forward(params, input_ids, input_mask, segment_ids, lmask, labels,
                     masked_sample, *, alpha=0.05):
    batch, seq = input_ids.shape
    hidden = params["tok_emb"].shape[1]
    num_class = params["w_lin"].shape[1]

    output_seq = bert_encoder_standin(params, input_ids, input_mask, segment_ids)
    output_seq2 = bert_encoder_standin(params, masked_sample, input_mask, segment_ids)

    h1 = output_seq.reshape(-1, hidden)
    h2 = output_seq2.reshape(-1, hidden)
    # TODO(synk): nn.Dropout is stochastic in training; treated as identity (eval mode).

    loss, cp = craspell_head(h1, h2, params,
                             input_ids.reshape(-1), labels.reshape(-1),
                             lmask.reshape(-1), alpha=alpha)
    cp_probabilities = cp.reshape(batch, seq, num_class)
    return loss, cp_probabilities


def init_params(key, num_class, hidden, max_sen_len, copy_dim=384):
    ks = jax.random.split(key, 6)

    def init(k, shape, scale=0.02):
        return (scale * jax.random.normal(k, shape)).astype(jnp.float32)

    return {
        # BERT stand-in embeddings
        "tok_emb": init(ks[0], (num_class, hidden)),
        "pos_emb": init(ks[1], (max_sen_len, hidden)),
        "seg_emb": init(ks[2], (2, hidden)),
        # nn.Linear(hidden, num_class)   (stored as (in, out) for x @ W)
        "w_lin": init(ks[3], (hidden, num_class)),
        "b_lin": jnp.zeros((num_class,), jnp.float32),
        # nn.Linear(hidden, 384)
        "w_copy": init(ks[4], (hidden, copy_dim)),
        "b_copy": jnp.zeros((copy_dim,), jnp.float32),
        # nn.LayerNorm(384)
        "ln_g": jnp.ones((copy_dim,), jnp.float32),
        "ln_b": jnp.zeros((copy_dim,), jnp.float32),
        # nn.Linear(384, 1)
        "w_cl": init(ks[5], (copy_dim, 1)),
        "b_cl": jnp.zeros((1,), jnp.float32),
    }


if __name__ == "__main__":
    B, S, H, C = 2, 8, 32, 32       # batch, max_sen_len, hidden_size, num_class(=vocab)

    key = jax.random.PRNGKey(0)
    kp, k1, k2, k3 = jax.random.split(key, 4)
    params = init_params(kp, num_class=C, hidden=H, max_sen_len=S)

    input_ids = jax.random.randint(k1, (B, S), 0, C, dtype=jnp.int32)
    masked_sample = jax.random.randint(k2, (B, S), 0, C, dtype=jnp.int32)
    labels = jax.random.randint(k3, (B, S), 0, C, dtype=jnp.int32)
    segment_ids = jnp.zeros((B, S), jnp.int32)
    input_mask = jnp.ones((B, S), jnp.int32)
    lmask = jnp.ones((B, S), jnp.float32)

    loss, cp_probabilities = craspell_forward(
        params, input_ids, input_mask, segment_ids, lmask, labels, masked_sample,
        alpha=0.05)
    jax.block_until_ready((loss, cp_probabilities))

    assert cp_probabilities.shape == (B, S, C)
    assert loss.shape == ()
    assert bool(jnp.isfinite(loss))
    print("KERNEL_OK")
</pallas_src>

<mosaic_0001>
module attributes {stable_mosaic.version = 11 : i64} {
  func.func @_craspell_row_tile_kernel(%arg0: i32, %arg1: memref<16x32xbf16, #tpu.memory_space<vmem>>, %arg2: memref<16x32xbf16, #tpu.memory_space<vmem>>, %arg3: memref<32x128xbf16, #tpu.memory_space<vmem>>, %arg4: memref<1x128xf32, #tpu.memory_space<vmem>>, %arg5: memref<32x384xbf16, #tpu.memory_space<vmem>>, %arg6: memref<1x384xf32, #tpu.memory_space<vmem>>, %arg7: memref<1x384xf32, #tpu.memory_space<vmem>>, %arg8: memref<1x384xf32, #tpu.memory_space<vmem>>, %arg9: memref<1x384xf32, #tpu.memory_space<vmem>>, %arg10: memref<1x1xf32, #tpu.memory_space<vmem>>, %arg11: memref<16x1xi32, #tpu.memory_space<vmem>>, %arg12: memref<16x1xi32, #tpu.memory_space<vmem>>, %arg13: memref<16x1xf32, #tpu.memory_space<vmem>>, %arg14: memref<16x128xf32, #tpu.memory_space<vmem>>, %arg15: memref<1x8x128xf32, #tpu.memory_space<vmem>>) attributes {dimension_semantics = [#tpu.dimension_semantics<parallel>], iteration_bounds = array<i64: 1>, scalar_prefetch = 0 : i64, scratch_operands = 0 : i64, tpu.core_type = #tpu.core_type<tc>, window_params = [{transform_indices = @transform_0, window_bounds = array<i64: 16, 32>}, {transform_indices = @transform_1, window_bounds = array<i64: 16, 32>}, {pipeline_mode = #tpu.pipeline_mode<synchronous>, transform_indices = @transform_2, window_bounds = array<i64: 32, 128>}, {pipeline_mode = #tpu.pipeline_mode<synchronous>, transform_indices = @transform_3, window_bounds = array<i64: 1, 128>}, {pipeline_mode = #tpu.pipeline_mode<synchronous>, transform_indices = @transform_4, window_bounds = array<i64: 32, 384>}, {pipeline_mode = #tpu.pipeline_mode<synchronous>, transform_indices = @transform_5, window_bounds = array<i64: 1, 384>}, {pipeline_mode = #tpu.pipeline_mode<synchronous>, transform_indices = @transform_6, window_bounds = array<i64: 1, 384>}, {pipeline_mode = #tpu.pipeline_mode<synchronous>, transform_indices = @transform_7, window_bounds = array<i64: 1, 384>}, {pipeline_mode = #tpu.pipeline_mode<synchronous>, transform_indices = @transform_8, window_bounds = array<i64: 1, 384>}, {pipeline_mode = #tpu.pipeline_mode<synchronous>, transform_indices = @transform_9, window_bounds = array<i64: 1, 1>}, {transform_indices = @transform_10, window_bounds = array<i64: 16, 1>}, {transform_indices = @transform_11, window_bounds = array<i64: 16, 1>}, {transform_indices = @transform_12, window_bounds = array<i64: 16, 1>}, {transform_indices = @transform_13, window_bounds = array<i64: 16, 128>}, {transform_indices = @transform_14, window_bounds = array<i64: 1, 8, 128>}]} {
    %c0 = arith.constant 0 : index
    %c0_0 = arith.constant 0 : index
    %0 = vector.load %arg1[%c0, %c0_0] : memref<16x32xbf16, #tpu.memory_space<vmem>>, vector<16x32xbf16>
    %c0_1 = arith.constant 0 : index
    %c0_2 = arith.constant 0 : index
    %1 = vector.load %arg2[%c0_1, %c0_2] : memref<16x32xbf16, #tpu.memory_space<vmem>>, vector<16x32xbf16>
    %c0_3 = arith.constant 0 : index
    %c0_4 = arith.constant 0 : index
    %2 = vector.load %arg3[%c0_3, %c0_4] : memref<32x128xbf16, #tpu.memory_space<vmem>>, vector<32x128xbf16>
    %c0_5 = arith.constant 0 : index
    %c0_6 = arith.constant 0 : index
    %3 = vector.load %arg4[%c0_5, %c0_6] : memref<1x128xf32, #tpu.memory_space<vmem>>, vector<1x128xf32>
    %cst = arith.constant dense<0.000000e+00> : vector<16x128xf32>
    %4 = tpu.matmul %0, %2, %cst {dimension_numbers = #tpu.dot_dimension_numbers<[1], [0], [0], [1], [0, 0, 1, 1], [], []>} : vector<16x32xbf16>, vector<32x128xbf16>, vector<16x128xf32> -> vector<16x128xf32>
    %5 = vector.broadcast %3 : vector<1x128xf32> to vector<16x128xf32>
    %6 = arith.addf %4, %5 : vector<16x128xf32>
    %cst_7 = arith.constant dense<0xFF800000> : vector<16xf32>
    %7 = vector.multi_reduction <maximumf>, %6, %cst_7 [1] : vector<16x128xf32> to vector<16xf32>
    %8 = vector.shape_cast %7 : vector<16xf32> to vector<16x1xf32>
    %9 = vector.broadcast %8 : vector<16x1xf32> to vector<16x128xf32>
    %10 = arith.subf %6, %9 : vector<16x128xf32>
    %11 = math.exp %10 : vector<16x128xf32>
    %cst_8 = arith.constant dense<0.000000e+00> : vector<16xf32>
    %12 = vector.multi_reduction <add>, %11, %cst_8 [1] : vector<16x128xf32> to vector<16xf32>
    %13 = vector.shape_cast %12 : vector<16xf32> to vector<16x1xf32>
    %14 = tpu.reciprocal %13 {approx = true} : vector<16x1xf32> -> vector<16x1xf32>
    %15 = vector.broadcast %14 : vector<16x1xf32> to vector<16x128xf32>
    %16 = arith.mulf %11, %15 : vector<16x128xf32>
    %17 = vector.broadcast %8 : vector<16x1xf32> to vector<16x128xf32>
    %18 = arith.subf %6, %17 : vector<16x128xf32>
    %19 = math.log %13 : vector<16x1xf32>
    %20 = vector.broadcast %19 : vector<16x1xf32> to vector<16x128xf32>
    %21 = arith.subf %18, %20 : vector<16x128xf32>
    %cst_9 = arith.constant dense<0.000000e+00> : vector<16x128xf32>
    %22 = tpu.matmul %1, %2, %cst_9 {dimension_numbers = #tpu.dot_dimension_numbers<[1], [0], [0], [1], [0, 0, 1, 1], [], []>} : vector<16x32xbf16>, vector<32x128xbf16>, vector<16x128xf32> -> vector<16x128xf32>
    %23 = vector.broadcast %3 : vector<1x128xf32> to vector<16x128xf32>
    %24 = arith.addf %22, %23 : vector<16x128xf32>
    %cst_10 = arith.constant dense<0xFF800000> : vector<16xf32>
    %25 = vector.multi_reduction <maximumf>, %24, %cst_10 [1] : vector<16x128xf32> to vector<16xf32>
    %26 = vector.shape_cast %25 : vector<16xf32> to vector<16x1xf32>
    %27 = vector.broadcast %26 : vector<16x1xf32> to vector<16x128xf32>
    %28 = arith.subf %24, %27 : vector<16x128xf32>
    %29 = math.exp %28 : vector<16x128xf32>
    %cst_11 = arith.constant dense<0.000000e+00> : vector<16xf32>
    %30 = vector.multi_reduction <add>, %29, %cst_11 [1] : vector<16x128xf32> to vector<16xf32>
    %31 = vector.shape_cast %30 : vector<16xf32> to vector<16x1xf32>
    %32 = tpu.reciprocal %31 {approx = true} : vector<16x1xf32> -> vector<16x1xf32>
    %33 = vector.broadcast %32 : vector<16x1xf32> to vector<16x128xf32>
    %34 = arith.mulf %29, %33 : vector<16x128xf32>
    %35 = vector.broadcast %26 : vector<16x1xf32> to vector<16x128xf32>
    %36 = arith.subf %24, %35 : vector<16x128xf32>
    %37 = math.log %31 : vector<16x1xf32>
    %38 = vector.broadcast %37 : vector<16x1xf32> to vector<16x128xf32>
    %39 = arith.subf %36, %38 : vector<16x128xf32>
    %c0_12 = arith.constant 0 : index
    %c0_13 = arith.constant 0 : index
    %40 = vector.load %arg5[%c0_12, %c0_13] : memref<32x384xbf16, #tpu.memory_space<vmem>>, vector<32x384xbf16>
    %cst_14 = arith.constant dense<0.000000e+00> : vector<16x384xf32>
    %41 = tpu.matmul %0, %40, %cst_14 {dimension_numbers = #tpu.dot_dimension_numbers<[1], [0], [0], [1], [0, 0, 1, 1], [], []>} : vector<16x32xbf16>, vector<32x384xbf16>, vector<16x384xf32> -> vector<16x384xf32>
    %c0_15 = arith.constant 0 : index
    %c0_16 = arith.constant 0 : index
    %42 = vector.load %arg6[%c0_15, %c0_16] : memref<1x384xf32, #tpu.memory_space<vmem>>, vector<1x384xf32>
    %43 = vector.broadcast %42 : vector<1x384xf32> to vector<16x384xf32>
    %44 = arith.addf %41, %43 : vector<16x384xf32>
    %cst_17 = arith.constant 5.000000e-01 : f32
    %45 = vector.broadcast %cst_17 : f32 to vector<16x384xf32>
    %46 = arith.mulf %45, %44 : vector<16x384xf32>
    %cst_18 = arith.constant 4.471500e-02 : f32
    %47 = vector.broadcast %cst_18 : f32 to vector<16x384xf32>
    %48 = arith.mulf %47, %44 : vector<16x384xf32>
    %49 = arith.mulf %48, %44 : vector<16x384xf32>
    %50 = arith.mulf %49, %44 : vector<16x384xf32>
    %51 = arith.addf %44, %50 : vector<16x384xf32>
    %cst_19 = arith.constant 0.797884583 : f32
    %52 = vector.broadcast %cst_19 : f32 to vector<16x384xf32>
    %53 = arith.mulf %52, %51 : vector<16x384xf32>
    %54 = math.tanh %53 : vector<16x384xf32>
    %cst_20 = arith.constant 1.000000e+00 : f32
    %55 = vector.broadcast %cst_20 : f32 to vector<16x384xf32>
    %56 = arith.addf %55, %54 : vector<16x384xf32>
    %57 = arith.mulf %46, %56 : vector<16x384xf32>
    %cst_21 = arith.constant dense<0.000000e+00> : vector<16xf32>
    %58 = vector.multi_reduction <add>, %57, %cst_21 [1] : vector<16x384xf32> to vector<16xf32>
    %59 = vector.shape_cast %58 : vector<16xf32> to vector<16x1xf32>
    %cst_22 = arith.constant 3.840000e+02 : f32
    %60 = vector.broadcast %cst_22 : f32 to vector<16x1xf32>
    %61 = arith.divf %59, %60 : vector<16x1xf32>
    %62 = vector.broadcast %61 : vector<16x1xf32> to vector<16x384xf32>
    %63 = arith.subf %57, %62 : vector<16x384xf32>
    %64 = arith.mulf %63, %63 : vector<16x384xf32>
    %cst_23 = arith.constant dense<0.000000e+00> : vector<16xf32>
    %65 = vector.multi_reduction <add>, %64, %cst_23 [1] : vector<16x384xf32> to vector<16xf32>
    %66 = vector.shape_cast %65 : vector<16xf32> to vector<16x1xf32>
    %cst_24 = arith.constant 3.840000e+02 : f32
    %67 = vector.broadcast %cst_24 : f32 to vector<16x1xf32>
    %68 = arith.divf %66, %67 : vector<16x1xf32>
    %69 = vector.broadcast %61 : vector<16x1xf32> to vector<16x384xf32>
    %70 = arith.subf %57, %69 : vector<16x384xf32>
    %cst_25 = arith.constant 9.99999974E-6 : f32
    %71 = vector.broadcast %cst_25 : f32 to vector<16x1xf32>
    %72 = arith.addf %68, %71 : vector<16x1xf32>
    %73 = math.rsqrt %72 : vector<16x1xf32>
    %74 = vector.broadcast %73 : vector<16x1xf32> to vector<16x384xf32>
    %75 = arith.mulf %70, %74 : vector<16x384xf32>
    %c0_26 = arith.constant 0 : index
    %c0_27 = arith.constant 0 : index
    %76 = vector.load %arg7[%c0_26, %c0_27] : memref<1x384xf32, #tpu.memory_space<vmem>>, vector<1x384xf32>
    %77 = vector.broadcast %76 : vector<1x384xf32> to vector<16x384xf32>
    %78 = arith.mulf %75, %77 : vector<16x384xf32>
    %c0_28 = arith.constant 0 : index
    %c0_29 = arith.constant 0 : index
    %79 = vector.load %arg8[%c0_28, %c0_29] : memref<1x384xf32, #tpu.memory_space<vmem>>, vector<1x384xf32>
    %80 = vector.broadcast %79 : vector<1x384xf32> to vector<16x384xf32>
    %81 = arith.addf %78, %80 : vector<16x384xf32>
    %c0_30 = arith.constant 0 : index
    %c0_31 = arith.constant 0 : index
    %82 = vector.load %arg9[%c0_30, %c0_31] : memref<1x384xf32, #tpu.memory_space<vmem>>, vector<1x384xf32>
    %83 = vector.broadcast %82 : vector<1x384xf32> to vector<16x384xf32>
    %84 = arith.mulf %81, %83 : vector<16x384xf32>
    %cst_32 = arith.constant dense<0.000000e+00> : vector<16xf32>
    %85 = vector.multi_reduction <add>, %84, %cst_32 [1] : vector<16x384xf32> to vector<16xf32>
    %86 = vector.shape_cast %85 : vector<16xf32> to vector<16x1xf32>
    %c0_33 = arith.constant 0 : index
    %c0_34 = arith.constant 0 : index
    %87 = vector.load %arg10[%c0_33, %c0_34] : memref<1x1xf32, #tpu.memory_space<vmem>>, vector<1x1xf32>
    %88 = vector.broadcast %87 : vector<1x1xf32> to vector<16x1xf32>
    %89 = arith.addf %86, %88 : vector<16x1xf32>
    %cst_35 = arith.constant 0.000000e+00 : f32
    %90 = vector.broadcast %cst_35 : f32 to vector<16x1xf32>
    %91 = arith.subf %90, %89 : vector<16x1xf32>
    %92 = math.exp %91 : vector<16x1xf32>
    %cst_36 = arith.constant 1.000000e+00 : f32
    %93 = vector.broadcast %cst_36 : f32 to vector<16x1xf32>
    %94 = arith.addf %93, %92 : vector<16x1xf32>
    %95 = tpu.reciprocal %94 {approx = true} : vector<16x1xf32> -> vector<16x1xf32>
    %96 = tpu.iota {dimensions = array<i32: 1>} : vector<16x128xi32>
    %c0_37 = arith.constant 0 : index
    %c0_38 = arith.constant 0 : index
    %97 = vector.load %arg11[%c0_37, %c0_38] : memref<16x1xi32, #tpu.memory_space<vmem>>, vector<16x1xi32>
    %98 = vector.broadcast %97 : vector<16x1xi32> to vector<16x128xi32>
    %99 = arith.cmpi eq, %96, %98 : vector<16x128xi32>
    %100 = arith.extui %99 : vector<16x128xi1> to vector<16x128xi32>
    %101 = arith.sitofp %100 : vector<16x128xi32> to vector<16x128xf32>
    %102 = vector.broadcast %95 : vector<16x1xf32> to vector<16x128xf32>
    %103 = arith.mulf %102, %101 : vector<16x128xf32>
    %cst_39 = arith.constant 1.000000e+00 : f32
    %104 = vector.broadcast %cst_39 : f32 to vector<16x1xf32>
    %105 = arith.subf %104, %95 : vector<16x1xf32>
    %106 = vector.broadcast %105 : vector<16x1xf32> to vector<16x128xf32>
    %107 = arith.mulf %106, %16 : vector<16x128xf32>
    %108 = arith.addf %103, %107 : vector<16x128xf32>
    %cst_40 = arith.constant 1.000000e-10 : f32
    %cst_41 = arith.constant 0.99999988 : f32
    %109 = vector.broadcast %cst_40 : f32 to vector<16x128xf32>
    %110 = arith.maximumf %109, %108 : vector<16x128xf32>
    %111 = vector.broadcast %cst_41 : f32 to vector<16x128xf32>
    %112 = arith.minimumf %111, %110 : vector<16x128xf32>
    %113 = math.log %112 : vector<16x128xf32>
    %c0_42 = arith.constant 0 : index
    %c0_43 = arith.constant 0 : index
    %114 = vector.load %arg14[%c0_42, %c0_43] : memref<16x128xf32, #tpu.memory_space<vmem>>, vector<16x128xf32>
    tpu.vector_store %arg14[%c0_42, %c0_43], %112 {strides = array<i32>} : memref<16x128xf32, #tpu.memory_space<vmem>>, vector<16x128xf32>,
    %c0_44 = arith.constant 0 : index
    %c0_45 = arith.constant 0 : index
    %115 = vector.load %arg12[%c0_44, %c0_45] : memref<16x1xi32, #tpu.memory_space<vmem>>, vector<16x1xi32>
    %116 = vector.broadcast %115 : vector<16x1xi32> to vector<16x128xi32>
    %117 = arith.cmpi eq, %96, %116 : vector<16x128xi32>
    %118 = arith.extui %117 : vector<16x128xi1> to vector<16x128xi32>
    %119 = arith.sitofp %118 : vector<16x128xi32> to vector<16x128xf32>
    %c0_46 = arith.constant 0 : index
    %c0_47 = arith.constant 0 : index
    %120 = vector.load %arg13[%c0_46, %c0_47] : memref<16x1xf32, #tpu.memory_space<vmem>>, vector<16x1xf32>
    %121 = arith.mulf %119, %113 : vector<16x128xf32>
    %cst_48 = arith.constant dense<0.000000e+00> : vector<16xf32>
    %122 = vector.multi_reduction <add>, %121, %cst_48 [1] : vector<16x128xf32> to vector<16xf32>
    %123 = vector.shape_cast %122 : vector<16xf32> to vector<16x1xf32>
    %cst_49 = arith.constant 0.000000e+00 : f32
    %124 = vector.broadcast %cst_49 : f32 to vector<16x1xf32>
    %125 = arith.subf %124, %123 : vector<16x1xf32>
    %126 = arith.mulf %125, %120 : vector<16x1xf32>
    %127 = vector.shape_cast %126 : vector<16x1xf32> to vector<1x16x1xf32>
    %cst_50 = arith.constant dense<0.000000e+00> : vector<1xf32>
    %128 = vector.multi_reduction <add>, %127, %cst_50 [1, 2] : vector<1x16x1xf32> to vector<1xf32>
    %129 = vector.shape_cast %128 : vector<1xf32> to vector<1x1x1xf32>
    %130 = vector.extract %129[0, 0, 0] : f32 from vector<1x1x1xf32>
    %131 = arith.subf %21, %39 : vector<16x128xf32>
    %132 = arith.mulf %16, %131 : vector<16x128xf32>
    %cst_51 = arith.constant dense<0.000000e+00> : vector<16xf32>
    %133 = vector.multi_reduction <add>, %132, %cst_51 [1] : vector<16x128xf32> to vector<16xf32>
    %134 = vector.shape_cast %133 : vector<16xf32> to vector<16x1xf32>
    %135 = arith.subf %39, %21 : vector<16x128xf32>
    %136 = arith.mulf %34, %135 : vector<16x128xf32>
    %cst_52 = arith.constant dense<0.000000e+00> : vector<16xf32>
    %137 = vector.multi_reduction <add>, %136, %cst_52 [1] : vector<16x128xf32> to vector<16xf32>
    %138 = vector.shape_cast %137 : vector<16xf32> to vector<16x1xf32>
    %139 = arith.addf %134, %138 : vector<16x1xf32>
    %cst_53 = arith.constant 5.000000e-01 : f32
    %140 = vector.broadcast %cst_53 : f32 to vector<16x1xf32>
    %141 = arith.mulf %140, %139 : vector<16x1xf32>
    %142 = arith.mulf %141, %120 : vector<16x1xf32>
    %143 = vector.shape_cast %142 : vector<16x1xf32> to vector<1x16x1xf32>
    %cst_54 = arith.constant dense<0.000000e+00> : vector<1xf32>
    %144 = vector.multi_reduction <add>, %143, %cst_54 [1, 2] : vector<1x16x1xf32> to vector<1xf32>
    %145 = vector.shape_cast %144 : vector<1xf32> to vector<1x1x1xf32>
    %146 = vector.extract %145[0, 0, 0] : f32 from vector<1x1x1xf32>
    %147 = vector.shape_cast %120 : vector<16x1xf32> to vector<1x16x1xf32>
    %cst_55 = arith.constant dense<0.000000e+00> : vector<1xf32>
    %148 = vector.multi_reduction <add>, %147, %cst_55 [1, 2] : vector<1x16x1xf32> to vector<1xf32>
    %149 = vector.shape_cast %148 : vector<1xf32> to vector<1x1x1xf32>
    %150 = vector.extract %149[0, 0, 0] : f32 from vector<1x1x1xf32>
    %151 = tpu.iota {dimensions = array<i32: 1>} : vector<1x8x128xi32>
    %c0_i32 = arith.constant 0 : i32
    %152 = vector.broadcast %c0_i32 : i32 to vector<1x8x128xi32>
    %153 = arith.cmpi eq, %151, %152 : vector<1x8x128xi32>
    %cst_56 = arith.constant 0.000000e+00 : f32
    %154 = vector.broadcast %130 : f32 to vector<1x8x128xf32>
    %155 = vector.broadcast %cst_56 : f32 to vector<1x8x128xf32>
    %156 = arith.select %153, %154, %155 : vector<1x8x128xi1>, vector<1x8x128xf32>
    %c1_i32 = arith.constant 1 : i32
    %157 = vector.broadcast %c1_i32 : i32 to vector<1x8x128xi32>
    %158 = arith.cmpi eq, %151, %157 : vector<1x8x128xi32>
    %cst_57 = arith.constant 0.000000e+00 : f32
    %159 = vector.broadcast %146 : f32 to vector<1x8x128xf32>
    %160 = vector.broadcast %cst_57 : f32 to vector<1x8x128xf32>
    %161 = arith.select %158, %159, %160 : vector<1x8x128xi1>, vector<1x8x128xf32>
    %162 = arith.addf %156, %161 : vector<1x8x128xf32>
    %c2_i32 = arith.constant 2 : i32
    %163 = vector.broadcast %c2_i32 : i32 to vector<1x8x128xi32>
    %164 = arith.cmpi eq, %151, %163 : vector<1x8x128xi32>
    %cst_58 = arith.constant 0.000000e+00 : f32
    %165 = vector.broadcast %150 : f32 to vector<1x8x128xf32>
    %166 = vector.broadcast %cst_58 : f32 to vector<1x8x128xf32>
    %167 = arith.select %164, %165, %166 : vector<1x8x128xi1>, vector<1x8x128xf32>
    %168 = arith.addf %162, %167 : vector<1x8x128xf32>
    %c0_59 = arith.constant 0 : index
    %c0_60 = arith.constant 0 : index
    %c0_61 = arith.constant 0 : index
    %169 = vector.load %arg15[%c0_59, %c0_60, %c0_61] : memref<1x8x128xf32, #tpu.memory_space<vmem>>, vector<1x8x128xf32>
    tpu.vector_store %arg15[%c0_59, %c0_60, %c0_61], %168 {strides = array<i32>} : memref<1x8x128xf32, #tpu.memory_space<vmem>>, vector<1x8x128xf32>,
    return
  }
  func.func @transform_0(%arg0: i32) -> (i32, i32) {
    %c0_i32 = arith.constant 0 : i32
    %c0_i32_0 = arith.constant 0 : i32
    return %arg0, %c0_i32 : i32, i32
  }
  func.func @transform_1(%arg0: i32) -> (i32, i32) {
    %c0_i32 = arith.constant 0 : i32
    %c0_i32_0 = arith.constant 0 : i32
    return %arg0, %c0_i32 : i32, i32
  }
  func.func @transform_2(%arg0: i32) -> (i32, i32) {
    %c0_i32 = arith.constant 0 : i32
    %c0_i32_0 = arith.constant 0 : i32
    %c0_i32_1 = arith.constant 0 : i32
    return %c0_i32, %c0_i32_0 : i32, i32
  }
  func.func @transform_3(%arg0: i32) -> (i32, i32) {
    %c0_i32 = arith.constant 0 : i32
    %c0_i32_0 = arith.constant 0 : i32
    %c0_i32_1 = arith.constant 0 : i32
    return %c0_i32, %c0_i32_0 : i32, i32
  }
  func.func @transform_4(%arg0: i32) -> (i32, i32) {
    %c0_i32 = arith.constant 0 : i32
    %c0_i32_0 = arith.constant 0 : i32
    %c0_i32_1 = arith.constant 0 : i32
    return %c0_i32, %c0_i32_0 : i32, i32
  }
  func.func @transform_5(%arg0: i32) -> (i32, i32) {
    %c0_i32 = arith.constant 0 : i32
    %c0_i32_0 = arith.constant 0 : i32
    %c0_i32_1 = arith.constant 0 : i32
    return %c0_i32, %c0_i32_0 : i32, i32
  }
  func.func @transform_6(%arg0: i32) -> (i32, i32) {
    %c0_i32 = arith.constant 0 : i32
    %c0_i32_0 = arith.constant 0 : i32
    %c0_i32_1 = arith.constant 0 : i32
    return %c0_i32, %c0_i32_0 : i32, i32
  }
  func.func @transform_7(%arg0: i32) -> (i32, i32) {
    %c0_i32 = arith.constant 0 : i32
    %c0_i32_0 = arith.constant 0 : i32
    %c0_i32_1 = arith.constant 0 : i32
    return %c0_i32, %c0_i32_0 : i32, i32
  }
  func.func @transform_8(%arg0: i32) -> (i32, i32) {
    %c0_i32 = arith.constant 0 : i32
    %c0_i32_0 = arith.constant 0 : i32
    %c0_i32_1 = arith.constant 0 : i32
    return %c0_i32, %c0_i32_0 : i32, i32
  }
  func.func @transform_9(%arg0: i32) -> (i32, i32) {
    %c0_i32 = arith.constant 0 : i32
    %c0_i32_0 = arith.constant 0 : i32
    %c0_i32_1 = arith.constant 0 : i32
    return %c0_i32, %c0_i32_0 : i32, i32
  }
  func.func @transform_10(%arg0: i32) -> (i32, i32) {
    %c0_i32 = arith.constant 0 : i32
    %c0_i32_0 = arith.constant 0 : i32
    return %arg0, %c0_i32 : i32, i32
  }
  func.func @transform_11(%arg0: i32) -> (i32, i32) {
    %c0_i32 = arith.constant 0 : i32
    %c0_i32_0 = arith.constant 0 : i32
    return %arg0, %c0_i32 : i32, i32
  }
  func.func @transform_12(%arg0: i32) -> (i32, i32) {
    %c0_i32 = arith.constant 0 : i32
    %c0_i32_0 = arith.constant 0 : i32
    return %arg0, %c0_i32 : i32, i32
  }
  func.func @transform_13(%arg0: i32) -> (i32, i32) {
    %c0_i32 = arith.constant 0 : i32
    %c0_i32_0 = arith.constant 0 : i32
    return %arg0, %c0_i32 : i32, i32
  }
  func.func @transform_14(%arg0: i32) -> (i32, i32, i32) {
    %c0_i32 = arith.constant 0 : i32
    %c0_i32_0 = arith.constant 0 : i32
    %c0_i32_1 = arith.constant 0 : i32
    return %arg0, %c0_i32, %c0_i32_0 : i32, i32, i32
  }
}

</mosaic_0001>

<llo_original>
// kernel: tpu_custom_call.1
$region0: #{tpu_custom_call.1}
  #allocation0 [shape = 'u32[]', space=smem, size = 0x4, offset = 0x4, fixed_abs, tag = 'smem constant byte address 0x4 - core index']
  #allocation1 [shape = 'u32[144,128]{1,0:T(1,128)}', space=vmem, size = 0x12000, scoped, tag = 'internal scratch']
  #allocation2 [shape = 'f32[1,1]{1,0:T(1,128)S(1)}', space=vmem, size = 0x200, scoped, tag = 'scoped memory for tpu_custom_call.1']
  %s0 = inlined_call_operand.hbm [shape: bf16[16,32], index: 0, kind: input, shape index: {}]
  %s1 = inlined_call_operand.hbm [shape: bf16[16,32], index: 1, kind: input, shape index: {}]
  %s2 = inlined_call_operand.vmem [shape: bf16[32,128], index: 2, kind: input, shape index: {}]
  %s3 = inlined_call_operand.hbm [shape: f32[1,128], index: 3, kind: input, shape index: {}]
  %s4 = inlined_call_operand.vmem [shape: bf16[32,384], index: 4, kind: input, shape index: {}]
  %s5 = inlined_call_operand.vmem [shape: f32[1,384], index: 5, kind: input, shape index: {}]
  %s6 = inlined_call_operand.vmem [shape: f32[1,384], index: 6, kind: input, shape index: {}]
  %s7 = inlined_call_operand.vmem [shape: f32[1,384], index: 7, kind: input, shape index: {}]
  %s8 = inlined_call_operand.vmem [shape: f32[1,384], index: 8, kind: input, shape index: {}]
  %s9 = inlined_call_operand.<no memory space> [shape: f32[1,1], index: 9, kind: input, shape index: {}]
  %s10 = inlined_call_operand.vmem [shape: s32[16,1], index: 10, kind: input, shape index: {}]
  %s11 = inlined_call_operand.vmem [shape: s32[16,1], index: 11, kind: input, shape index: {}]
  %s12 = inlined_call_operand.vmem [shape: f32[16,1], index: 12, kind: input, shape index: {}]
  %s13 = inlined_call_operand.hbm [shape: f32[16,128], index: 13, kind: output, shape index: {0}]
  %s14 = inlined_call_operand.hbm [shape: f32[1,8,128], index: 14, kind: output, shape index: {1}]
  %15 = xla_tuple %s13, %s14
  %s16 = sld [smem:[#allocation0]]
  $region82: #{tpu_custom_call.1} parent=0
    _
  %s18 = ssub.s32 1, %s16
  %s19 = scalar_select 0, %s18, %s16
  %v20 = vstv %s9
  %21 = vst [vmem:[#allocation2] sm:$0x1] %v20
  $region1: #{tpu_custom_call.1} parent=0
    #allocation3 [shape = 'u8[4096]{0}', space=vmem, size = 0x1000, scoped, tag = 'input window, operand 0, single buffered']
    #allocation4 [shape = 's32[1]{0}', space=sflag, size = 0x4, scoped, tag = 'scoped memory for tpu_custom_call.1']
    #allocation5 [shape = 's32[1]{0}', space=sflag, size = 0x4, scoped, tag = 'scoped memory for tpu_custom_call.1']
    #allocation6 [shape = 'u8[4096]{0}', space=vmem, size = 0x1000, scoped, tag = 'input window, operand 1, single buffered']
    #allocation7 [shape = 's32[1]{0}', space=sflag, size = 0x4, scoped, tag = 'scoped memory for tpu_custom_call.1']
    #allocation8 [shape = 'u8[512]{0}', space=vmem, size = 0x400, scoped, tag = 'input window, operand 3, single buffered']
    #allocation9 [shape = 'u8[8192]{0}', space=vmem, size = 0x2000, scoped, tag = 'output window, operand 0, single buffered']
    #allocation10 [shape = 'u8[4096]{0}', space=vmem, size = 0x1000, scoped, tag = 'output window, operand 1, single buffered']
    #allocation11 [shape = 's32[1]{0}', space=sflag, size = 0x4, scoped, tag = 'scoped memory for tpu_custom_call.1']
    %22 = vsyncpa [#allocation4], 0
    %23 = vsyncpa [#allocation7], 0
    %24 = vsyncpa [#allocation5], 0
    %25 = vsyncpa [#allocation11], 0
    // Predicated region
    $region2: #{tpu_custom_call.1} parent=1 // pred_check
      _
    $region3: #{tpu_custom_call.1} parent=1 // pred_check_branch
      %27 = sbr.rel (0) target = $region5
    $region4: #{tpu_custom_call.1} parent=1 // pred_region
      %s29 = ssub.s32 128, 128
      %30 = vsyncadd [#allocation4], %s29
      %s31 = sshll.u32 [#allocation3], 4
      %s32 = int_to_ptr.vmem [resolvable:$true] %s31
      %37 = dma.hbm_to_vmem [thread:$0]  %s0, 128, %s32, [#allocation4], 64, 64, 4
    $region5: #{tpu_custom_call.1} parent=1 // pred_fallthru
      _
    // Predicated region
    $region6: #{tpu_custom_call.1} parent=1 // pred_check
      _
    $region7: #{tpu_custom_call.1} parent=1 // pred_check_branch
      %39 = sbr.rel (0) target = $region9
    $region8: #{tpu_custom_call.1} parent=1 // pred_region
      %s41 = ssub.s32 128, 128
      %42 = vsyncadd [#allocation7], %s41
      %s43 = sshll.u32 [#allocation6], 4
      %s44 = int_to_ptr.vmem [resolvable:$true] %s43
      %49 = dma.hbm_to_vmem [thread:$0]  %s1, 128, %s44, [#allocation7], 64, 64, 4
    $region9: #{tpu_custom_call.1} parent=1 // pred_fallthru
      _
    // Predicated region
    $region10: #{tpu_custom_call.1} parent=1 // pred_check
      _
    $region11: #{tpu_custom_call.1} parent=1 // pred_check_branch
      %51 = sbr.rel (0) target = $region13
    $region12: #{tpu_custom_call.1} parent=1 // pred_region
      _
    $region13: #{tpu_custom_call.1} parent=1 // pred_fallthru
      _
    // Predicated region
    $region14: #{tpu_custom_call.1} parent=1 // pred_check
      _
    $region15: #{tpu_custom_call.1} parent=1 // pred_check_branch
      %53 = sbr.rel (0) target = $region17
    $region16: #{tpu_custom_call.1} parent=1 // pred_region
      %s55 = ssub.s32 16, 16
      %56 = vsyncadd [#allocation7], %s55
      %s58 = sshll.u32 [#allocation8], 4
      %s59 = int_to_ptr.vmem [resolvable:$true] %s58
      %61 = dma.hbm_to_vmem [thread:$0]  %s3, 16, %s59, [#allocation7]
    $region17: #{tpu_custom_call.1} parent=1 // pred_fallthru
      _
    // Predicated region
    $region18: #{tpu_custom_call.1} parent=1 // pred_check
      _
    $region19: #{tpu_custom_call.1} parent=1 // pred_check_branch
      %63 = sbr.rel (0) target = $region21
    $region20: #{tpu_custom_call.1} parent=1 // pred_region
      _
    $region21: #{tpu_custom_call.1} parent=1 // pred_fallthru
      _
    // Predicated region
    $region22: #{tpu_custom_call.1} parent=1 // pred_check
      _
    $region23: #{tpu_custom_call.1} parent=1 // pred_check_branch
      %65 = sbr.rel (0) target = $region25
    $region24: #{tpu_custom_call.1} parent=1 // pred_region
      _
    $region25: #{tpu_custom_call.1} parent=1 // pred_fallthru
      _
    // Predicated region
    $region26: #{tpu_custom_call.1} parent=1 // pred_check
      _
    $region27: #{tpu_custom_call.1} parent=1 // pred_check_branch
      %67 = sbr.rel (0) target = $region29
    $region28: #{tpu_custom_call.1} parent=1 // pred_region
      _
    $region29: #{tpu_custom_call.1} parent=1 // pred_fallthru
      _
    // Predicated region
    $region30: #{tpu_custom_call.1} parent=1 // pred_check
      _
    $region31: #{tpu_custom_call.1} parent=1 // pred_check_branch
      %69 = sbr.rel (0) target = $region33
    $region32: #{tpu_custom_call.1} parent=1 // pred_region
      _
    $region33: #{tpu_custom_call.1} parent=1 // pred_fallthru
      _
    // Predicated region
    $region34: #{tpu_custom_call.1} parent=1 // pred_check
      _
    $region35: #{tpu_custom_call.1} parent=1 // pred_check_branch
      %71 = sbr.rel (0) target = $region37
    $region36: #{tpu_custom_call.1} parent=1 // pred_region
      _
    $region37: #{tpu_custom_call.1} parent=1 // pred_fallthru
      _
    // Predicated region
    $region38: #{tpu_custom_call.1} parent=1 // pred_check
      _
    $region39: #{tpu_custom_call.1} parent=1 // pred_check_branch
      %73 = sbr.rel (0) target = $region41
    $region40: #{tpu_custom_call.1} parent=1 // pred_region
      _
    $region41: #{tpu_custom_call.1} parent=1 // pred_fallthru
      _
    // Predicated region
    $region42: #{tpu_custom_call.1} parent=1 // pred_check
      _
    $region43: #{tpu_custom_call.1} parent=1 // pred_check_branch
      %75 = sbr.rel (0) target = $region45
    $region44: #{tpu_custom_call.1} parent=1 // pred_region
      _
    $region45: #{tpu_custom_call.1} parent=1 // pred_fallthru
      _
    // Predicated region
    $region46: #{tpu_custom_call.1} parent=1 // pred_check
      _
    $region47: #{tpu_custom_call.1} parent=1 // pred_check_branch
      %77 = sbr.rel (0) target = $region49
    $region48: #{tpu_custom_call.1} parent=1 // pred_region
      _
    $region49: #{tpu_custom_call.1} parent=1 // pred_fallthru
      _
    // Predicated region
    $region50: #{tpu_custom_call.1} parent=1 // pred_check
      _
    $region51: #{tpu_custom_call.1} parent=1 // pred_check_branch
      %79 = sbr.rel (0) target = $region53
    $region52: #{tpu_custom_call.1} parent=1 // pred_region
      _
    $region53: #{tpu_custom_call.1} parent=1 // pred_fallthru
      _
    // Predicated region
    $region54: #{tpu_custom_call.1} parent=1 // pred_check
      _
    $region55: #{tpu_custom_call.1} parent=1 // pred_check_branch
      %81 = sbr.rel (0) target = $region57
    $region56: #{tpu_custom_call.1} parent=1 // pred_region
      %82 = dma.done [#allocation4], 128
    $region57: #{tpu_custom_call.1} parent=1 // pred_fallthru
      _
    // Predicated region
    $region58: #{tpu_custom_call.1} parent=1 // pred_check
      _
    $region59: #{tpu_custom_call.1} parent=1 // pred_check_branch
      %84 = sbr.rel (0) target = $region61
    $region60: #{tpu_custom_call.1} parent=1 // pred_region
      %85 = dma.done [#allocation7], 128
    $region61: #{tpu_custom_call.1} parent=1 // pred_fallthru
      _
    // Predicated region
    $region62: #{tpu_custom_call.1} parent=1 // pred_check
      _
    $region63: #{tpu_custom_call.1} parent=1 // pred_check_branch
      %87 = sbr.rel (0) target = $region65
    $region64: #{tpu_custom_call.1} parent=1 // pred_region
      %88 = dma.done [#allocation7], 16
    $region65: #{tpu_custom_call.1} parent=1 // pred_fallthru
      _
    %v90 = vld [vmem:[#allocation3] sm:$0xf]
    %v91 = vld [vmem:[#allocation3 + $0x4] sm:$0xf]
    %v92 = vld [vmem:[#allocation6] sm:$0xf]
    %v93 = vld [vmem:[#allocation6 + $0x4] sm:$0xf]
    %v94 = vld [vmem:[%s2] sm:$0xf]
    %v95 = vld [vmem:[%s2 + $0x4] sm:$0xf]
    %v96 = vld [vmem:[%s2 + $0x8] sm:$0xf]
    %v97 = vld [vmem:[%s2 + $0xc] sm:$0xf]
    %v98 = vld [vmem:[#allocation8] sm:$0x1]
    %v100 = vlaneseq
    %v101 = vshrl.u32 %v100, 7
    %v102 = vsub.s32 0, %v101
    %v103 = vrot.slane %v98, %v102
    %v107 = vunpack.c.l.b16 %v90
    %v108 = vunpack.c.l.b16 %v91
    %v109 = vpack.c.b16 %v108, %v107
    %v114 = vunpack.c.l.b16 %v94
    %v115 = vunpack.c.l.b16 %v95
    %v116 = vunpack.c.l.b16 %v96
    %v117 = vunpack.c.l.b16 %v97
    %v118 = vpack.c.b16 %v115, %v114
    %v119 = vpack.c.b16 %v117, %v116
    %vm122 = vcmask 261120
    %v124 = vsel %vm122, %v109, 0
    %126 = vmatprep.subr.bf16.mxu0 0
    %127 = vmatpush1.bf16.msra.mxu0 %v118
    %128 = vmatprep.subr.bf16.mxu0 0
    %129 = vmatpush1.bf16.msra.mxu0 %v119
    %130 = vmatprep.subr.bf16.mxu0 0
    %131 = vmatpush1.bf16.msra.mxu0 0
    %132 = vmatprep.subr.bf16.mxu0 0
    %133 = vmatpush1.bf16.msra.mxu0 0
    %134 = vmatprep.subr.bf16.mxu0 0
    %135 = vmatpush1.bf16.msra.mxu0 0
    %136 = vmatprep.subr.bf16.mxu0 0
    %137 = vmatpush1.bf16.msra.mxu0 0
    %138 = vmatprep.subr.bf16.mxu0 0
    %139 = vmatpush1.bf16.msra.mxu0 0
    %140 = vmatprep.subr.bf16.mxu0 0
    %141 = vmatpush1.bf16.msra.mxu0 0
    %142 = vmatprep.subr.bf16.mxu0 0
    %143 = vmatpush1.bf16.msra.mxu0 0
    %144 = vmatprep.subr.bf16.mxu0 0
    %145 = vmatpush1.bf16.msra.mxu0 0
    %146 = vmatprep.subr.bf16.mxu0 0
    %147 = vmatpush1.bf16.msra.mxu0 0
    %148 = vmatprep.subr.bf16.mxu0 0
    %149 = vmatpush1.bf16.msra.mxu0 0
    %150 = vmatprep.subr.bf16.mxu0 0
    %151 = vmatpush1.bf16.msra.mxu0 0
    %152 = vmatprep.subr.bf16.mxu0 0
    %153 = vmatpush1.bf16.msra.mxu0 0
    %154 = vmatprep.subr.bf16.mxu0 0
    %155 = vmatpush1.bf16.msra.mxu0 0
    %156 = vmatprep.subr.bf16.mxu0 0
    %157 = vmatpush1.bf16.msra.mxu0 0
    %158 = vmatprep.mubr.bf16.mxu0 0
    %159 = vmatmul.mubr.bf16.gmra.mrb[0].mxu0 %v124
    %v160 = vpop.f32.mrb[0].mxu0
    %v161 = vadd.f32 %v103, %v160
    %v162 = vpop.f32.mrb[0].mxu0
    %v163 = vpop.f32.mrb[0].mxu0
    %v164 = vadd.f32 %v103, %v163
    %v165 = vpop.f32.mrb[0].mxu0
    %166 = vdwg.mxu0
    %167 = vmax.xlane.f32.xlu0 %v161
    %v168 = vpop.xlane.xlu0 %167
    %169 = vmax.xlane.f32.xlu0 %v164
    %v170 = vpop.xlane.xlu0 %169
    %v171 = vsub.f32 %v161, %v168
    %v172 = vsub.f32 %v164, %v170
    %v173 = vmul.f32 %v171, 1.442695
    %v174 = vpow.pop %v173
    %v175 = vmul.f32 %v172, 1.442695
    %v176 = vpow.pop %v175
    %177 = vadd.xlane.f32.xlu0 %v174
    %v178 = vpop.xlane.xlu0 %177
    %179 = vadd.xlane.f32.xlu0 %v176
    %v180 = vpop.xlane.xlu0 %179
    %v181 = vrcp.pop %v178
    %v182 = vrcp.pop %v180
    %v183 = vmul.f32 %v174, %v181
    %v184 = vmul.f32 %v176, %v182
    %v185 = vlog2.pop %v178
    %v186 = vmul.f32 %v185, 0.6931472
    %v187 = vlog2.pop %v180
    %v188 = vmul.f32 %v187, 0.6931472
    %v189 = vsub.f32 %v171, %v186
    %v190 = vsub.f32 %v172, %v188
    %v193 = vunpack.c.l.b16 %v92
    %v194 = vunpack.c.l.b16 %v93
    %v195 = vpack.c.b16 %v194, %v193
    %v197 = vsel %vm122, %v195, 0
    %199 = vmatprep.subr.bf16.mxu0 0
    %200 = vmatpush1.bf16.msra.mxu0 %v118
    %201 = vmatprep.subr.bf16.mxu0 0
    %202 = vmatpush1.bf16.msra.mxu0 %v119
    %203 = vmatprep.subr.bf16.mxu0 0
    %204 = vmatpush1.bf16.msra.mxu0 0
    %205 = vmatprep.subr.bf16.mxu0 0
    %206 = vmatpush1.bf16.msra.mxu0 0
    %207 = vmatprep.subr.bf16.mxu0 0
    %208 = vmatpush1.bf16.msra.mxu0 0
    %209 = vmatprep.subr.bf16.mxu0 0
    %210 = vmatpush1.bf16.msra.mxu0 0
    %211 = vmatprep.subr.bf16.mxu0 0
    %212 = vmatpush1.bf16.msra.mxu0 0
    %213 = vmatprep.subr.bf16.mxu0 0
    %214 = vmatpush1.bf16.msra.mxu0 0
    %215 = vmatprep.subr.bf16.mxu0 0
    %216 = vmatpush1.bf16.msra.mxu0 0
    %217 = vmatprep.subr.bf16.mxu0 0
    %218 = vmatpush1.bf16.msra.mxu0 0
    %219 = vmatprep.subr.bf16.mxu0 0
    %220 = vmatpush1.bf16.msra.mxu0 0
    %221 = vmatprep.subr.bf16.mxu0 0
    %222 = vmatpush1.bf16.msra.mxu0 0
    %223 = vmatprep.subr.bf16.mxu0 0
    %224 = vmatpush1.bf16.msra.mxu0 0
    %225 = vmatprep.subr.bf16.mxu0 0
    %226 = vmatpush1.bf16.msra.mxu0 0
    %227 = vmatprep.subr.bf16.mxu0 0
    %228 = vmatpush1.bf16.msra.mxu0 0
    %229 = vmatprep.subr.bf16.mxu0 0
    %230 = vmatpush1.bf16.msra.mxu0 0
    %231 = vmatprep.mubr.bf16.mxu0 0
    %232 = vmatmul.mubr.bf16.gmra.mrb[0].mxu0 %v197
    %v233 = vpop.f32.mrb[0].mxu0
    %v234 = vadd.f32 %v103, %v233
    %v235 = vpop.f32.mrb[0].mxu0
    %v236 = vpop.f32.mrb[0].mxu0
    %v237 = vadd.f32 %v103, %v236
    %v238 = vpop.f32.mrb[0].mxu0
    %239 = vdwg.mxu0
    %240 = vmax.xlane.f32.xlu0 %v234
    %v241 = vpop.xlane.xlu0 %240
    %242 = vmax.xlane.f32.xlu0 %v237
    %v243 = vpop.xlane.xlu0 %242
    %v244 = vsub.f32 %v234, %v241
    %v245 = vsub.f32 %v237, %v243
    %v246 = vmul.f32 %v244, 1.442695
    %v247 = vpow.pop %v246
    %v248 = vmul.f32 %v245, 1.442695
    %v249 = vpow.pop %v248
    %250 = vadd.xlane.f32.xlu0 %v247
    %v251 = vpop.xlane.xlu0 %250
    %252 = vadd.xlane.f32.xlu0 %v249
    %v253 = vpop.xlane.xlu0 %252
    %v254 = vrcp.pop %v251
    %v255 = vrcp.pop %v253
    %v256 = vmul.f32 %v247, %v254
    %v257 = vmul.f32 %v249, %v255
    %v258 = vlog2.pop %v251
    %v259 = vmul.f32 %v258, 0.6931472
    %v260 = vlog2.pop %v253
    %v261 = vmul.f32 %v260, 0.6931472
    %v262 = vsub.f32 %v244, %v259
    %v263 = vsub.f32 %v245, %v261
    %v264 = vld [vmem:[%s4] sm:$0xff]
    %v265 = vld [vmem:[%s4 + $0x8] sm:$0xf]
    %v266 = vld [vmem:[%s4 + $0xc] sm:$0xff]
    %v267 = vld [vmem:[%s4 + $0x14] sm:$0xf]
    %v268 = vld [vmem:[%s4 + $0x18] sm:$0xff]
    %v269 = vld [vmem:[%s4 + $0x20] sm:$0xf]
    %v270 = vld [vmem:[%s4 + $0x24] sm:$0xff]
    %v271 = vld [vmem:[%s4 + $0x2c] sm:$0xf]
    %v272 = vld [vmem:[%s5] sm:$0x7]
    %v274 = vlaneseq
    %v275 = vshrl.u32 %v274, 7
    %v276 = vsub.s32 0, %v275
    %v277 = vrot.slane %v272, %v276
    %v278 = vlaneseq
    %v279 = vshrl.u32 %v278, 7
    %v280 = vsub.s32 1, %v279
    %v281 = vrot.slane %v272, %v280
    %v282 = vlaneseq
    %v283 = vshrl.u32 %v282, 7
    %v284 = vsub.s32 2, %v283
    %v285 = vrot.slane %v272, %v284
    %v297 = vunpack.c.l.b16 %v264
    %v298 = vunpack.c.h.b16 %v264
    %v299 = vunpack.c.l.b16 %v265
    %v300 = vunpack.c.l.b16 %v266
    %v301 = vunpack.c.h.b16 %v266
    %v302 = vunpack.c.l.b16 %v267
    %v303 = vunpack.c.l.b16 %v268
    %v304 = vunpack.c.h.b16 %v268
    %v305 = vunpack.c.l.b16 %v269
    %v306 = vunpack.c.l.b16 %v270
    %v307 = vunpack.c.h.b16 %v270
    %v308 = vunpack.c.l.b16 %v271
    %v309 = vpack.c.b16 %v300, %v297
    %v310 = vpack.c.b16 %v301, %v298
    %v311 = vpack.c.b16 %v302, %v299
    %v312 = vpack.c.b16 %v306, %v303
    %v313 = vpack.c.b16 %v307, %v304
    %v314 = vpack.c.b16 %v308, %v305
    %321 = vmatprep.subr.bf16.mxu0 %v310
    %322 = vmatpush1.bf16.msra.mxu0 %v309
    %323 = vmatprep.subr.bf16.mxu0 %v313
    %324 = vmatpush1.bf16.msra.mxu0 %v312
    %325 = vmatprep.subr.bf16.mxu0 0
    %326 = vmatpush1.bf16.msra.mxu0 0
    %327 = vmatprep.subr.bf16.mxu0 0
    %328 = vmatpush1.bf16.msra.mxu0 0
    %329 = vmatprep.subr.bf16.mxu0 0
    %330 = vmatpush1.bf16.msra.mxu0 0
    %331 = vmatprep.subr.bf16.mxu0 0
    %332 = vmatpush1.bf16.msra.mxu0 0
    %333 = vmatprep.subr.bf16.mxu0 0
    %334 = vmatpush1.bf16.msra.mxu0 0
    %335 = vmatprep.subr.bf16.mxu0 0
    %336 = vmatpush1.bf16.msra.mxu0 0
    %337 = vmatprep.subr.bf16.mxu0 0
    %338 = vmatpush1.bf16.msra.mxu0 0
    %339 = vmatprep.subr.bf16.mxu0 0
    %340 = vmatpush1.bf16.msra.mxu0 0
    %341 = vmatprep.subr.bf16.mxu0 0
    %342 = vmatpush1.bf16.msra.mxu0 0
    %343 = vmatprep.subr.bf16.mxu0 0
    %344 = vmatpush1.bf16.msra.mxu0 0
    %345 = vmatprep.subr.bf16.mxu0 0
    %346 = vmatpush1.bf16.msra.mxu0 0
    %347 = vmatprep.subr.bf16.mxu0 0
    %348 = vmatpush1.bf16.msra.mxu0 0
    %349 = vmatprep.subr.bf16.mxu0 0
    %350 = vmatpush1.bf16.msra.mxu0 0
    %351 = vmatprep.subr.bf16.mxu0 0
    %352 = vmatpush1.bf16.msra.mxu0 0
    %353 = vmatprep.mubr.bf16.mxu0 0
    %354 = vmatmul.mubr.bf16.gmra.mrb[0].mxu0 %v124
    %v355 = vpop.f32.mrb[0].mxu0
    %v356 = vadd.f32 %v277, %v355
    %v357 = vpop.f32.mrb[0].mxu0
    %v358 = vadd.f32 %v281, %v357
    %v359 = vpop.f32.mrb[0].mxu0
    %v360 = vadd.f32 %v277, %v359
    %v361 = vpop.f32.mrb[0].mxu0
    %v362 = vadd.f32 %v281, %v361
    %363 = vdwg.mxu0
    %364 = vmatprep.subr.bf16.mxu0 0
    %365 = vmatpush1.bf16.msra.mxu0 %v311
    %366 = vmatprep.subr.bf16.mxu0 0
    %367 = vmatpush1.bf16.msra.mxu0 %v314
    %368 = vmatprep.subr.bf16.mxu0 0
    %369 = vmatpush1.bf16.msra.mxu0 0
    %370 = vmatprep.subr.bf16.mxu0 0
    %371 = vmatpush1.bf16.msra.mxu0 0
    %372 = vmatprep.subr.bf16.mxu0 0
    %373 = vmatpush1.bf16.msra.mxu0 0
    %374 = vmatprep.subr.bf16.mxu0 0
    %375 = vmatpush1.bf16.msra.mxu0 0
    %376 = vmatprep.subr.bf16.mxu0 0
    %377 = vmatpush1.bf16.msra.mxu0 0
    %378 = vmatprep.subr.bf16.mxu0 0
    %379 = vmatpush1.bf16.msra.mxu0 0
    %380 = vmatprep.subr.bf16.mxu0 0
    %381 = vmatpush1.bf16.msra.mxu0 0
    %382 = vmatprep.subr.bf16.mxu0 0
    %383 = vmatpush1.bf16.msra.mxu0 0
    %384 = vmatprep.subr.bf16.mxu0 0
    %385 = vmatpush1.bf16.msra.mxu0 0
    %386 = vmatprep.subr.bf16.mxu0 0
    %387 = vmatpush1.bf16.msra.mxu0 0
    %388 = vmatprep.subr.bf16.mxu0 0
    %389 = vmatpush1.bf16.msra.mxu0 0
    %390 = vmatprep.subr.bf16.mxu0 0
    %391 = vmatpush1.bf16.msra.mxu0 0
    %392 = vmatprep.subr.bf16.mxu0 0
    %393 = vmatpush1.bf16.msra.mxu0 0
    %394 = vmatprep.subr.bf16.mxu0 0
    %395 = vmatpush1.bf16.msra.mxu0 0
    %396 = vmatprep.mubr.bf16.mxu0 0
    %397 = vmatmul.mubr.bf16.gmra.mrb[0].mxu0 %v124
    %v398 = vpop.f32.mrb[0].mxu0
    %v399 = vadd.f32 %v285, %v398
    %v400 = vpop.f32.mrb[0].mxu0
    %v401 = vpop.f32.mrb[0].mxu0
    %v402 = vadd.f32 %v285, %v401
    %v403 = vpop.f32.mrb[0].mxu0
    %404 = vdwg.mxu0
    %v405 = vmul.f32 %v356, 0.5
    %v406 = vmul.f32 %v358, 0.5
    %v407 = vmul.f32 %v399, 0.5
    %v408 = vmul.f32 %v360, 0.5
    %v409 = vmul.f32 %v362, 0.5
    %v410 = vmul.f32 %v402, 0.5
    %v411 = vmul.f32 %v356, 0.044715
    %v412 = vmul.f32 %v358, 0.044715
    %v413 = vmul.f32 %v399, 0.044715
    %v414 = vmul.f32 %v360, 0.044715
    %v415 = vmul.f32 %v362, 0.044715
    %v416 = vmul.f32 %v402, 0.044715
    %v417 = vmul.f32 %v411, %v356
    %v418 = vmul.f32 %v412, %v358
    %v419 = vmul.f32 %v413, %v399
    %v420 = vmul.f32 %v414, %v360
    %v421 = vmul.f32 %v415, %v362
    %v422 = vmul.f32 %v416, %v402
    %v423 = vmul.f32 %v417, %v356
    %v424 = vmul.f32 %v418, %v358
    %v425 = vmul.f32 %v419, %v399
    %v426 = vmul.f32 %v420, %v360
    %v427 = vmul.f32 %v421, %v362
    %v428 = vmul.f32 %v422, %v402
    %v429 = vadd.f32 %v356, %v423
    %v430 = vadd.f32 %v358, %v424
    %v431 = vadd.f32 %v399, %v425
    %v432 = vadd.f32 %v360, %v426
    %v433 = vadd.f32 %v362, %v427
    %v434 = vadd.f32 %v402, %v428
    %v435 = vmul.f32 %v429, 0.7978846
    %v436 = vmul.f32 %v430, 0.7978846
    %v437 = vmul.f32 %v431, 0.7978846
    %v438 = vmul.f32 %v432, 0.7978846
    %v439 = vmul.f32 %v433, 0.7978846
    %v440 = vmul.f32 %v434, 0.7978846
    %v441 = vtanh.pop %v435
    %v442 = vtanh.pop %v436
    %v443 = vtanh.pop %v437
    %v444 = vtanh.pop %v438
    %v445 = vtanh.pop %v439
    %v446 = vtanh.pop %v440
    %v447 = vadd.f32 %v441, 1.0
    %v448 = vadd.f32 %v442, 1.0
    %v449 = vadd.f32 %v443, 1.0
    %v450 = vadd.f32 %v444, 1.0
    %v451 = vadd.f32 %v445, 1.0
    %v452 = vadd.f32 %v446, 1.0
    %v453 = vmul.f32 %v405, %v447
    %v454 = vmul.f32 %v406, %v448
    %v455 = vmul.f32 %v407, %v449
    %v456 = vmul.f32 %v408, %v450
    %v457 = vmul.f32 %v409, %v451
    %v458 = vmul.f32 %v410, %v452
    %v459 = vadd.f32 %v453, %v454
    %v460 = vadd.f32 %v459, %v455
    %461 = vadd.xlane.f32.xlu0 %v460
    %v462 = vpop.xlane.xlu0 %461
    %v463 = vadd.f32 %v456, %v457
    %v464 = vadd.f32 %v463, %v458
    %465 = vadd.xlane.f32.xlu0 %v464
    %v466 = vpop.xlane.xlu0 %465
    %v467 = vrcp.pop 384.0
    %v468 = vmul.f32 %v462, %v467
    %v469 = vmul.f32 %v466, %v467
    %v470 = vsub.f32 %v453, %v468
    %v471 = vsub.f32 %v454, %v468
    %v472 = vsub.f32 %v455, %v468
    %v473 = vsub.f32 %v456, %v469
    %v474 = vsub.f32 %v457, %v469
    %v475 = vsub.f32 %v458, %v469
    %v476 = vmul.f32 %v470, %v470
    %v477 = vmul.f32 %v471, %v471
    %v478 = vmul.f32 %v472, %v472
    %v479 = vmul.f32 %v473, %v473
    %v480 = vmul.f32 %v474, %v474
    %v481 = vmul.f32 %v475, %v475
    %v482 = vadd.f32 %v476, %v477
    %v483 = vadd.f32 %v482, %v478
    %484 = vadd.xlane.f32.xlu0 %v483
    %v485 = vpop.xlane.xlu0 %484
    %v486 = vadd.f32 %v479, %v480
    %v487 = vadd.f32 %v486, %v481
    %488 = vadd.xlane.f32.xlu0 %v487
    %v489 = vpop.xlane.xlu0 %488
    %v490 = vmul.f32 %v485, %v467
    %v491 = vmul.f32 %v489, %v467
    %v492 = vadd.f32 %v490, 1e-05
    %v493 = vadd.f32 %v491, 1e-05
    %v494 = vrsqrt.pop %v492
    %v495 = vrsqrt.pop %v493
    %v496 = vmul.f32 %v470, %v494
    %v497 = vmul.f32 %v471, %v494
    %v498 = vmul.f32 %v472, %v494
    %v499 = vmul.f32 %v473, %v495
    %v500 = vmul.f32 %v474, %v495
    %v501 = vmul.f32 %v475, %v495
    %v502 = vld [vmem:[%s6] sm:$0x7]
    %v504 = vlaneseq
    %v505 = vshrl.u32 %v504, 7
    %v506 = vsub.s32 0, %v505
    %v507 = vrot.slane %v502, %v506
    %v508 = vlaneseq
    %v509 = vshrl.u32 %v508, 7
    %v510 = vsub.s32 1, %v509
    %v511 = vrot.slane %v502, %v510
    %v512 = vlaneseq
    %v513 = vshrl.u32 %v512, 7
    %v514 = vsub.s32 2, %v513
    %v515 = vrot.slane %v502, %v514
    %v519 = vmul.f32 %v496, %v507
    %v520 = vmul.f32 %v497, %v511
    %v521 = vmul.f32 %v498, %v515
    %v522 = vmul.f32 %v499, %v507
    %v523 = vmul.f32 %v500, %v511
    %v524 = vmul.f32 %v501, %v515
    %v525 = vld [vmem:[%s7] sm:$0x7]
    %v527 = vlaneseq
    %v528 = vshrl.u32 %v527, 7
    %v529 = vsub.s32 0, %v528
    %v530 = vrot.slane %v525, %v529
    %v531 = vlaneseq
    %v532 = vshrl.u32 %v531, 7
    %v533 = vsub.s32 1, %v532
    %v534 = vrot.slane %v525, %v533
    %v535 = vlaneseq
    %v536 = vshrl.u32 %v535, 7
    %v537 = vsub.s32 2, %v536
    %v538 = vrot.slane %v525, %v537
    %v542 = vadd.f32 %v519, %v530
    %v543 = vadd.f32 %v520, %v534
    %v544 = vadd.f32 %v521, %v538
    %v545 = vadd.f32 %v522, %v530
    %v546 = vadd.f32 %v523, %v534
    %v547 = vadd.f32 %v524, %v538
    %v548 = vld [vmem:[%s8] sm:$0x7]
    %v550 = vlaneseq
    %v551 = vshrl.u32 %v550, 7
    %v552 = vsub.s32 0, %v551
    %v553 = vrot.slane %v548, %v552
    %v554 = vlaneseq
    %v555 = vshrl.u32 %v554, 7
    %v556 = vsub.s32 1, %v555
    %v557 = vrot.slane %v548, %v556
    %v558 = vlaneseq
    %v559 = vshrl.u32 %v558, 7
    %v560 = vsub.s32 2, %v559
    %v561 = vrot.slane %v548, %v560
    %v565 = vmul.f32 %v542, %v553
    %v566 = vmul.f32 %v543, %v557
    %v567 = vmul.f32 %v544, %v561
    %v568 = vmul.f32 %v545, %v553
    %v569 = vmul.f32 %v546, %v557
    %v570 = vmul.f32 %v547, %v561
    %v571 = vadd.f32 %v565, %v566
    %v572 = vadd.f32 %v571, %v567
    %573 = vadd.xlane.f32.xlu0 %v572
    %v574 = vpop.xlane.xlu0 %573
    %v575 = vadd.f32 %v568, %v569
    %v576 = vadd.f32 %v575, %v570
    %577 = vadd.xlane.f32.xlu0 %v576
    %v578 = vpop.xlane.xlu0 %577
    %v579 = vld [vmem:[#allocation2] sm:$0x1]
    %v581 = vlaneseq
    %v582 = vshrl.u32 %v581, 7
    %v583 = vsub.s32 0, %v582
    %v584 = vrot.slane %v579, %v583
    %v586 = vadd.f32 %v574, %v584
    %v587 = vadd.f32 %v578, %v584
    %v588 = vsub.f32 0.0, %v586
    %v589 = vsub.f32 0.0, %v587
    %v590 = vmul.f32 %v588, 1.442695
    %v591 = vpow.pop %v590
    %v592 = vmul.f32 %v589, 1.442695
    %v593 = vpow.pop %v592
    %v594 = vadd.f32 %v591, 1.0
    %v595 = vadd.f32 %v593, 1.0
    %v596 = vrcp.pop %v594
    %v597 = vrcp.pop %v595
    %v598 = vlaneseq
    %v599 = vand.u32 %v598, 127
    %v600 = vld [vmem:[%s10] sm:$0xff]
    %v601 = vld [vmem:[%s10 + $0x8] sm:$0xff]
    %602 = vset.pattern.permute.xlu0 0
    %603 = vperm.xlu0 %602, %v600
    %v604 = vpop.permute.xlu0 %603
    %605 = vset.pattern.permute.xlu0 0
    %606 = vperm.xlu0 %605, %v601
    %v607 = vpop.permute.xlu0 %606
    %vm608 = vcmp.eq.s32.totalorder %v599, %v604
    %vm609 = vcmp.eq.s32.totalorder %v599, %v607
    %v610 = vsel %vm608, 1, 0
    %v611 = vsel %vm609, 1, 0
    %v612 = vcvt.s32.f32 %v610
    %v613 = vcvt.s32.f32 %v611
    %615 = vset.pattern.permute.xlu0 0
    %616 = vperm.xlu0 %615, %v596
    %v617 = vpop.permute.xlu0 %616
    %620 = vset.pattern.permute.xlu0 0
    %621 = vperm.xlu0 %620, %v597
    %v622 = vpop.permute.xlu0 %621
    %v624 = vmul.f32 %v617, %v612
    %v625 = vmul.f32 %v622, %v613
    %v626 = vsub.f32 1.0, %v596
    %v627 = vsub.f32 1.0, %v597
    %629 = vset.pattern.permute.xlu0 0
    %630 = vperm.xlu0 %629, %v626
    %v631 = vpop.permute.xlu0 %630
    %634 = vset.pattern.permute.xlu0 0
    %635 = vperm.xlu0 %634, %v627
    %v636 = vpop.permute.xlu0 %635
    %v638 = vmul.f32 %v631, %v183
    %v639 = vmul.f32 %v636, %v184
    %v640 = vadd.f32 %v624, %v638
    %v641 = vadd.f32 %v625, %v639
    %v642 = vmax.f32 %v640, 1e-10
    %v643 = vmax.f32 %v641, 1e-10
    %v644 = vmin.f32 %v642, 0.9999999
    %v645 = vmin.f32 %v643, 0.9999999
    %v646 = vlog2.pop %v644
    %v647 = vmul.f32 %v646, 0.6931472
    %v648 = vlog2.pop %v645
    %v649 = vmul.f32 %v648, 0.6931472
    %650 = vst [vmem:[#allocation9] sm:$0xff] %v644
    %651 = vst [vmem:[#allocation9 + $0x8] sm:$0xff] %v645
    %v652 = vld [vmem:[%s11] sm:$0xff]
    %v653 = vld [vmem:[%s11 + $0x8] sm:$0xff]
    %654 = vset.pattern.permute.xlu0 0
    %655 = vperm.xlu0 %654, %v652
    %v656 = vpop.permute.xlu0 %655
    %657 = vset.pattern.permute.xlu0 0
    %658 = vperm.xlu0 %657, %v653
    %v659 = vpop.permute.xlu0 %658
    %vm660 = vcmp.eq.s32.totalorder %v599, %v656
    %vm661 = vcmp.eq.s32.totalorder %v599, %v659
    %v662 = vsel %vm660, 1, 0
    %v663 = vsel %vm661, 1, 0
    %v664 = vcvt.s32.f32 %v662
    %v665 = vcvt.s32.f32 %v663
    %v666 = vld [vmem:[%s12] sm:$0xff]
    %v667 = vld [vmem:[%s12 + $0x8] sm:$0xff]
    %v668 = vmul.f32 %v664, %v647
    %v669 = vmul.f32 %v665, %v649
    %670 = vadd.xlane.f32.xlu0 %v668
    %v671 = vpop.xlane.xlu0 %670
    %672 = vadd.xlane.f32.xlu0 %v669
    %v673 = vpop.xlane.xlu0 %672
    %v674 = vsub.f32 0.0, %v671
    %v675 = vsub.f32 0.0, %v673
    %v676 = vmul.f32 %v674, %v666
    %v677 = vmul.f32 %v675, %v667
    %vm678 = vcmask 7168
    %v679 = vsel %vm678, %v676, 0.0
    %v680 = vsel %vm678, %v677, 0.0
    %v681 = vadd.f32 %v679, %v680
    %682 = vadd.xlane.f32.xlu0 %v681
    %v683 = vpop.xlane.xlu0 %682
    %v684 = vrot.slane %v683, 4
    %v685 = vadd.f32 %v683, %v684
    %v686 = vrot.slane %v685, 2
    %v687 = vadd.f32 %v685, %v686
    %v688 = vrot.slane %v687, 1
    %v689 = vadd.f32 %v687, %v688
    %s690 = vtos %v689
    %v691 = vsub.f32 %v189, %v262
    %v692 = vsub.f32 %v190, %v263
    %v693 = vmul.f32 %v183, %v691
    %v694 = vmul.f32 %v184, %v692
    %695 = vadd.xlane.f32.xlu0 %v693
    %v696 = vpop.xlane.xlu0 %695
    %697 = vadd.xlane.f32.xlu0 %v694
    %v698 = vpop.xlane.xlu0 %697
    %v699 = vsub.f32 %v262, %v189
    %v700 = vsub.f32 %v263, %v190
    %v701 = vmul.f32 %v256, %v699
    %v702 = vmul.f32 %v257, %v700
    %703 = vadd.xlane.f32.xlu0 %v701
    %v704 = vpop.xlane.xlu0 %703
    %705 = vadd.xlane.f32.xlu0 %v702
    %v706 = vpop.xlane.xlu0 %705
    %v707 = vadd.f32 %v696, %v704
    %v708 = vadd.f32 %v698, %v706
    %v709 = vmul.f32 %v707, 0.5
    %v710 = vmul.f32 %v708, 0.5
    %v711 = vmul.f32 %v709, %v666
    %v712 = vmul.f32 %v710, %v667
    %v713 = vsel %vm678, %v711, 0.0
    %v714 = vsel %vm678, %v712, 0.0
    %v715 = vadd.f32 %v713, %v714
    %716 = vadd.xlane.f32.xlu0 %v715
    %v717 = vpop.xlane.xlu0 %716
    %v718 = vrot.slane %v717, 4
    %v719 = vadd.f32 %v717, %v718
    %v720 = vrot.slane %v719, 2
    %v721 = vadd.f32 %v719, %v720
    %v722 = vrot.slane %v721, 1
    %v723 = vadd.f32 %v721, %v722
    %s724 = vtos %v723
    %v725 = vsel %vm678, %v666, 0.0
    %v726 = vsel %vm678, %v667, 0.0
    %v727 = vadd.f32 %v725, %v726
    %728 = vadd.xlane.f32.xlu0 %v727
    %v729 = vpop.xlane.xlu0 %728
    %v730 = vrot.slane %v729, 4
    %v731 = vadd.f32 %v729, %v730
    %v732 = vrot.slane %v731, 2
    %v733 = vadd.f32 %v731, %v732
    %v734 = vrot.slane %v733, 1
    %v735 = vadd.f32 %v733, %v734
    %s736 = vtos %v735
    %v737 = vlaneseq
    %v738 = vshrl.u32 %v737, 7
    %vm739 = vcmp.eq.s32.totalorder %v738, 0
    %v740 = vstv %s690
    %v741 = vsel %vm739, %v740, 0.0
    %vm742 = vcmp.eq.s32.totalorder %v738, 1
    %v743 = vstv %s724
    %v744 = vsel %vm742, %v743, 0.0
    %v745 = vadd.f32 %v741, %v744
    %vm746 = vcmp.eq.s32.totalorder %v738, 2
    %v747 = vstv %s736
    %v748 = vsel %vm746, %v747, 0.0
    %v749 = vadd.f32 %v745, %v748
    %750 = vst [vmem:[#allocation10] sm:$0xff] %v749
    // Predicated region
    $region66: #{tpu_custom_call.1} parent=1 // pred_check
      _
    $region67: #{tpu_custom_call.1} parent=1 // pred_check_branch
      %752 = sbr.rel (0) target = $region69
    $region68: #{tpu_custom_call.1} parent=1 // pred_region
      %s754 = ssub.s32 256, 256
      %755 = vsyncadd [#allocation5], %s754
      %s756 = sshll.u32 [#allocation9], 4
      %s757 = int_to_ptr.vmem [resolvable:$true] %s756
      %762 = dma.vmem_to_hbm [thread:$0]  %s757, 256, %s13, [#allocation5], 128, 128, 8
    $region69: #{tpu_custom_call.1} parent=1 // pred_fallthru
      _
    // Predicated region
    $region70: #{tpu_custom_call.1} parent=1 // pred_check
      _
    $region71: #{tpu_custom_call.1} parent=1 // pred_check_branch
      %764 = sbr.rel (0) target = $region73
    $region72: #{tpu_custom_call.1} parent=1 // pred_region
      %s766 = ssub.s32 128, 128
      %767 = vsyncadd [#allocation11], %s766
      %s769 = sshll.u32 [#allocation10], 4
      %s770 = int_to_ptr.vmem [resolvable:$true] %s769
      %772 = dma.vmem_to_hbm [thread:$0]  %s770, 128, %s14, [#allocation11]
    $region73: #{tpu_custom_call.1} parent=1 // pred_fallthru
      _
    // Predicated region
    $region74: #{tpu_custom_call.1} parent=1 // pred_check
      _
    $region75: #{tpu_custom_call.1} parent=1 // pred_check_branch
      %774 = sbr.rel (0) target = $region77
    $region76: #{tpu_custom_call.1} parent=1 // pred_region
      %775 = dma.done [#allocation5], 256
    $region77: #{tpu_custom_call.1} parent=1 // pred_fallthru
      _
    // Predicated region
    $region78: #{tpu_custom_call.1} parent=1 // pred_check
      _
    $region79: #{tpu_custom_call.1} parent=1 // pred_check_branch
      %777 = sbr.rel (0) target = $region81
    $region80: #{tpu_custom_call.1} parent=1 // pred_region
      %778 = dma.done [#allocation11], 128
    $region81: #{tpu_custom_call.1} parent=1 // pred_fallthru
      _
    %779 = vsyncpa [#allocation4], 1
    %780 = vsyncpa [#allocation7], 1
    %781 = vsyncpa [#allocation5], 1
    %782 = vsyncpa [#allocation11], 1

</llo_original>
